<compile_context>
chip_gen: v7x
topology: tpu7x:2x2x1
jax: 0.10.0
libtpu: 0.0.40
codegen_flags: <defaults>
</compile_context>

<pallas_src>
import functools

import jax
import jax.numpy as jnp
from jax.experimental import pallas as pl
from jax.experimental.pallas import tpu as pltpu

_LANE = 128
_MAX_BLOCK_BATCH = 2048  # keeps x/out tiles + intermediates a few MiB (safe on v7x)


def _round_up(n, m):
    return ((n + m - 1) // m) * m


def _pad_feature(d):
    # Default tiny dims -> one 128-lane group (perfect v5e MXU tile, minimal padding).
    # Wide (>=128) dims -> 256 multiples to fill the v6e/v7x 256-wide MXU; this is
    # harmless-to-mildly-wasteful on v5e but never triggers for the default Net.
    if d <= _LANE:
        return _LANE
    return _round_up(d, 256)


def _pad2(a, shape):
    return jnp.pad(a, ((0, shape[0] - a.shape[0]), (0, shape[1] - a.shape[1])))


def _mlp_kernel(x_ref, w0_ref, w1_ref, w2_ref, w3_ref, o_ref):
    # One batch tile per grid step; the four (padded, bf16) weights are VMEM-resident.
    # x arrives f32 and un-padded in the lane dim; cast to bf16 here (HBM-bound kernel,
    # so the VPU cast is free).  MXU matmuls accumulate in f32; ReLU on the VPU in f32.
    h = jnp.dot(x_ref[...].astype(jnp.bfloat16), w0_ref[...],
                preferred_element_type=jnp.float32)
    h = jnp.maximum(h, 0.0).astype(jnp.bfloat16)
    h = jnp.dot(h, w1_ref[...], preferred_element_type=jnp.float32)
    h = jnp.maximum(h, 0.0).astype(jnp.bfloat16)
    h = jnp.dot(h, w2_ref[...], preferred_element_type=jnp.float32)
    h = jnp.maximum(h, 0.0).astype(jnp.bfloat16)
    h = jnp.dot(h, w3_ref[...], preferred_element_type=jnp.float32)
    o_ref[...] = h.astype(jnp.bfloat16)  # lane-dense, unmasked bf16 stores


def _pick_batch_tile(B, block_batch):
    if block_batch is not None:
        return block_batch
    if B <= _MAX_BLOCK_BATCH:
        return _round_up(max(B, 16), 16)          # single grid step
    # Even number of steps (>=4) so v7x's 2 TCs each get a full pipeline; harmless
    # extra steps (~0.35us each) on single-TC v5e/v6e.
    n_steps = max(4, 2 * pl.cdiv(B, 2 * _MAX_BLOCK_BATCH))
    return _round_up(pl.cdiv(B, n_steps), 16)


@functools.partial(jax.jit, static_argnames=("block_batch",))
def net_forward(x, w0, w1, w2, w3, *, block_batch=None):
    """Fused forward of Net (bias=False, bn=False, penultimate=False, n_hidden=2).

    Args:
      x:  (B, in_dim)        float32
      w0: (in_dim, hidden)   float32   (already transposed vs. PyTorch (out,in) layout)
      w1: (hidden, hidden)
      w2: (hidden, hidden)
      w3: (hidden, out_dim)
    Returns:
      (B, out_dim) float32
    """
    B, in_dim = x.shape
    hidden = w0.shape[1]
    out_dim = w3.shape[1]

    hid_p = _pad_feature(hidden)
    out_p = _pad_feature(out_dim)

    tb = _pick_batch_tile(B, block_batch)
    assert tb % 16 == 0, "batch tile must be a multiple of 16 (bf16 sublane packing)"
    b_pad = _round_up(B, tb)
    grid = (b_pad // tb,)

    # Zero padding of the weights is exact: padded hidden units are ReLU(0)=0 and
    # multiply zero weight rows downstream; padded output columns are sliced off.
    # Only the weights are padded/cast in the wrapper (tiny, read once); x streams
    # into the kernel directly from its original f32 (B, in_dim) layout.
    w0p = _pad2(w0, (in_dim, hid_p)).astype(jnp.bfloat16)
    w1p = _pad2(w1, (hid_p, hid_p)).astype(jnp.bfloat16)
    w2p = _pad2(w2, (hid_p, hid_p)).astype(jnp.bfloat16)
    w3p = _pad2(w3, (hid_p, out_p)).astype(jnp.bfloat16)

    flops = 2 * b_pad * (in_dim * hid_p + 2 * hid_p * hid_p + hid_p * out_p)
    bytes_accessed = (
        4 * B * in_dim                                              # f32 x reads
        + 2 * (w0p.size + w1p.size + w2p.size + w3p.size)           # bf16 weight reads
        + 2 * b_pad * out_p                                         # bf16 writes
    )

    out_padded = pl.pallas_call(
        _mlp_kernel,
        out_shape=jax.ShapeDtypeStruct((b_pad, out_p), jnp.bfloat16),
        grid=grid,
        in_specs=[
            # x: streamed per step, un-padded in the lane dim (block == full last dim).
            pl.BlockSpec((tb, in_dim), lambda i: (i, 0)),
            # Weights: constant index_maps -> fetched once, VMEM-resident.
            pl.BlockSpec((in_dim, hid_p), lambda i: (0, 0)),
            pl.BlockSpec((hid_p, hid_p), lambda i: (0, 0)),
            pl.BlockSpec((hid_p, hid_p), lambda i: (0, 0)),
            pl.BlockSpec((hid_p, out_p), lambda i: (0, 0)),
        ],
        out_specs=pl.BlockSpec((tb, out_p), lambda i: (i, 0)),
        compiler_params=pltpu.CompilerParams(
            dimension_semantics=("parallel",)),
        cost_estimate=pl.CostEstimate(
            flops=flops, transcendentals=0, bytes_accessed=bytes_accessed),
    )(x, w0p, w1p, w2p, w3p)

    return out_padded[:B, :out_dim].astype(jnp.float32)


def init_params(key, in_dim, hidden, out_dim):
    """Deterministic init matching nn.Linear shapes (PyTorch stores (out, in); we
    build that and transpose to (in, out) for the kernel)."""
    ks = jax.random.split(key, 4)

    def linear_w(k, fan_out, fan_in):
        bound = 1.0 / jnp.sqrt(fan_in)
        w_torch_layout = jax.random.uniform(
            k, (fan_out, fan_in), jnp.float32, minval=-bound, maxval=bound)
        return jnp.transpose(w_torch_layout)  # -> (fan_in, fan_out)

    w0 = linear_w(ks[0], hidden, in_dim)
    w1 = linear_w(ks[1], hidden, hidden)
    w2 = linear_w(ks[2], hidden, hidden)
    w3 = linear_w(ks[3], out_dim, hidden)
    return w0, w1, w2, w3


def reference_forward_f32(x, w0, w1, w2, w3):
    h = jnp.maximum(x @ w0, 0.0)
    h = jnp.maximum(h @ w1, 0.0)
    h = jnp.maximum(h @ w2, 0.0)
    return h @ w3


def reference_forward_bf16(x, w0, w1, w2, w3):
    """Mimics the kernel's arithmetic: bf16 operands, f32 accumulation, bf16 output."""
    h = x.astype(jnp.bfloat16)
    for w in (w0, w1, w2):
        h = jnp.dot(h, w.astype(jnp.bfloat16), preferred_element_type=jnp.float32)
        h = jnp.maximum(h, 0.0).astype(jnp.bfloat16)
    y = jnp.dot(h, w3.astype(jnp.bfloat16), preferred_element_type=jnp.float32)
    return y.astype(jnp.bfloat16).astype(jnp.float32)


if __name__ == "__main__":
    # Module defaults: hidden_size=10, n_hidden=2, bias=False, bn=False, penultimate=False.
    batch, in_dim, hidden, out_dim = 200, 16, 10, 4

    key = jax.random.PRNGKey(0)
    kx, kp = jax.random.split(key)
    x = jax.random.normal(kx, (batch, in_dim), jnp.float32)
    w0, w1, w2, w3 = init_params(kp, in_dim, hidden, out_dim)

    ref_bf16 = reference_forward_bf16(x, w0, w1, w2, w3)
    ref_f32 = reference_forward_f32(x, w0, w1, w2, w3)

    # 1) auto tile: single grid step (tb = 208) for this small batch.
    out_auto = jax.block_until_ready(net_forward(x, w0, w1, w2, w3))
    assert out_auto.shape == (batch, out_dim), out_auto.shape
    assert jnp.allclose(out_auto, ref_bf16, atol=1e-2, rtol=1e-2), "mismatch vs bf16 reference"
    assert jnp.allclose(out_auto, ref_f32, atol=5e-2, rtol=5e-2), "mismatch vs f32 reference"

    # 2) explicit small tile: exercises a 4-step grid and the padded last batch block.
    out_tiled = jax.block_until_ready(net_forward(x, w0, w1, w2, w3, block_batch=64))
    assert out_tiled.shape == (batch, out_dim), out_tiled.shape
    assert jnp.allclose(out_tiled, ref_bf16, atol=1e-2, rtol=1e-2), "mismatch vs bf16 reference (tiled)"
    assert jnp.allclose(out_tiled, ref_f32, atol=5e-2, rtol=5e-2), "mismatch vs f32 reference (tiled)"

    print("KERNEL_OK")
</pallas_src>

<mosaic_0001>
module attributes {stable_mosaic.version = 11 : i64} {
  func.func @_mlp_kernel(%arg0: i32, %arg1: memref<208x16xf32, #tpu.memory_space<vmem>>, %arg2: memref<16x128xbf16, #tpu.memory_space<vmem>>, %arg3: memref<128x128xbf16, #tpu.memory_space<vmem>>, %arg4: memref<128x128xbf16, #tpu.memory_space<vmem>>, %arg5: memref<128x128xbf16, #tpu.memory_space<vmem>>, %arg6: memref<208x128xbf16, #tpu.memory_space<vmem>>) attributes {dimension_semantics = [#tpu.dimension_semantics<parallel>], iteration_bounds = array<i64: 1>, scalar_prefetch = 0 : i64, scratch_operands = 0 : i64, tpu.core_type = #tpu.core_type<tc>, window_params = [{transform_indices = @transform_0, window_bounds = array<i64: 208, 16>}, {pipeline_mode = #tpu.pipeline_mode<synchronous>, transform_indices = @transform_1, window_bounds = array<i64: 16, 128>}, {pipeline_mode = #tpu.pipeline_mode<synchronous>, transform_indices = @transform_2, window_bounds = array<i64: 128, 128>}, {pipeline_mode = #tpu.pipeline_mode<synchronous>, transform_indices = @transform_3, window_bounds = array<i64: 128, 128>}, {pipeline_mode = #tpu.pipeline_mode<synchronous>, transform_indices = @transform_4, window_bounds = array<i64: 128, 128>}, {transform_indices = @transform_5, window_bounds = array<i64: 208, 128>}]} {
    %c0 = arith.constant 0 : index
    %c0_0 = arith.constant 0 : index
    %0 = vector.load %arg1[%c0, %c0_0] : memref<208x16xf32, #tpu.memory_space<vmem>>, vector<208x16xf32>
    %1 = arith.truncf %0 : vector<208x16xf32> to vector<208x16xbf16>
    %c0_1 = arith.constant 0 : index
    %c0_2 = arith.constant 0 : index
    %2 = vector.load %arg2[%c0_1, %c0_2] : memref<16x128xbf16, #tpu.memory_space<vmem>>, vector<16x128xbf16>
    %cst = arith.constant dense<0.000000e+00> : vector<208x128xf32>
    %3 = tpu.matmul %1, %2, %cst {dimension_numbers = #tpu.dot_dimension_numbers<[1], [0], [0], [1], [0, 0, 1, 1], [], []>} : vector<208x16xbf16>, vector<16x128xbf16>, vector<208x128xf32> -> vector<208x128xf32>
    %cst_3 = arith.constant 0.000000e+00 : f32
    %4 = vector.broadcast %cst_3 : f32 to vector<208x128xf32>
    %5 = arith.maximumf %3, %4 : vector<208x128xf32>
    %6 = arith.truncf %5 : vector<208x128xf32> to vector<208x128xbf16>
    %c0_4 = arith.constant 0 : index
    %c0_5 = arith.constant 0 : index
    %7 = vector.load %arg3[%c0_4, %c0_5] : memref<128x128xbf16, #tpu.memory_space<vmem>>, vector<128x128xbf16>
    %cst_6 = arith.constant dense<0.000000e+00> : vector<208x128xf32>
    %8 = tpu.matmul %6, %7, %cst_6 {dimension_numbers = #tpu.dot_dimension_numbers<[1], [0], [0], [1], [0, 0, 1, 1], [], []>} : vector<208x128xbf16>, vector<128x128xbf16>, vector<208x128xf32> -> vector<208x128xf32>
    %cst_7 = arith.constant 0.000000e+00 : f32
    %9 = vector.broadcast %cst_7 : f32 to vector<208x128xf32>
    %10 = arith.maximumf %8, %9 : vector<208x128xf32>
    %11 = arith.truncf %10 : vector<208x128xf32> to vector<208x128xbf16>
    %c0_8 = arith.constant 0 : index
    %c0_9 = arith.constant 0 : index
    %12 = vector.load %arg4[%c0_8, %c0_9] : memref<128x128xbf16, #tpu.memory_space<vmem>>, vector<128x128xbf16>
    %cst_10 = arith.constant dense<0.000000e+00> : vector<208x128xf32>
    %13 = tpu.matmul %11, %12, %cst_10 {dimension_numbers = #tpu.dot_dimension_numbers<[1], [0], [0], [1], [0, 0, 1, 1], [], []>} : vector<208x128xbf16>, vector<128x128xbf16>, vector<208x128xf32> -> vector<208x128xf32>
    %cst_11 = arith.constant 0.000000e+00 : f32
    %14 = vector.broadcast %cst_11 : f32 to vector<208x128xf32>
    %15 = arith.maximumf %13, %14 : vector<208x128xf32>
    %16 = arith.truncf %15 : vector<208x128xf32> to vector<208x128xbf16>
    %c0_12 = arith.constant 0 : index
    %c0_13 = arith.constant 0 : index
    %17 = vector.load %arg5[%c0_12, %c0_13] : memref<128x128xbf16, #tpu.memory_space<vmem>>, vector<128x128xbf16>
    %cst_14 = arith.constant dense<0.000000e+00> : vector<208x128xf32>
    %18 = tpu.matmul %16, %17, %cst_14 {dimension_numbers = #tpu.dot_dimension_numbers<[1], [0], [0], [1], [0, 0, 1, 1], [], []>} : vector<208x128xbf16>, vector<128x128xbf16>, vector<208x128xf32> -> vector<208x128xf32>
    %19 = arith.truncf %18 : vector<208x128xf32> to vector<208x128xbf16>
    %c0_15 = arith.constant 0 : index
    %c0_16 = arith.constant 0 : index
    %20 = vector.load %arg6[%c0_15, %c0_16] : memref<208x128xbf16, #tpu.memory_space<vmem>>, vector<208x128xbf16>
    tpu.vector_store %arg6[%c0_15, %c0_16], %19 {strides = array<i32>} : memref<208x128xbf16, #tpu.memory_space<vmem>>, vector<208x128xbf16>,
    return
  }
  func.func @transform_0(%arg0: i32) -> (i32, i32) {
    %c0_i32 = arith.constant 0 : i32
    %c0_i32_0 = arith.constant 0 : i32
    return %arg0, %c0_i32 : i32, i32
  }
  func.func @transform_1(%arg0: i32) -> (i32, i32) {
    %c0_i32 = arith.constant 0 : i32
    %c0_i32_0 = arith.constant 0 : i32
    %c0_i32_1 = arith.constant 0 : i32
    return %c0_i32, %c0_i32_0 : i32, i32
  }
  func.func @transform_2(%arg0: i32) -> (i32, i32) {
    %c0_i32 = arith.constant 0 : i32
    %c0_i32_0 = arith.constant 0 : i32
    %c0_i32_1 = arith.constant 0 : i32
    return %c0_i32, %c0_i32_0 : i32, i32
  }
  func.func @transform_3(%arg0: i32) -> (i32, i32) {
    %c0_i32 = arith.constant 0 : i32
    %c0_i32_0 = arith.constant 0 : i32
    %c0_i32_1 = arith.constant 0 : i32
    return %c0_i32, %c0_i32_0 : i32, i32
  }
  func.func @transform_4(%arg0: i32) -> (i32, i32) {
    %c0_i32 = arith.constant 0 : i32
    %c0_i32_0 = arith.constant 0 : i32
    %c0_i32_1 = arith.constant 0 : i32
    return %c0_i32, %c0_i32_0 : i32, i32
  }
  func.func @transform_5(%arg0: i32) -> (i32, i32) {
    %c0_i32 = arith.constant 0 : i32
    %c0_i32_0 = arith.constant 0 : i32
    return %arg0, %c0_i32 : i32, i32
  }
}

</mosaic_0001>

<llo_original>
// kernel: net_forward.1
$region0: #{net_forward.1}
  #allocation0 [shape = 'u32[]', space=smem, size = 0x4, offset = 0x4, fixed_abs, tag = 'smem constant byte address 0x4 - core index']
  #allocation1 [shape = 'u32[144,128]{1,0:T(1,128)}', space=vmem, size = 0x12000, scoped, tag = 'internal scratch']
  %s0 = inlined_call_operand.vmem [shape: f32[200,16], index: 0, kind: input, shape index: {}]
  %s1 = inlined_call_operand.vmem [shape: bf16[16,128], index: 1, kind: input, shape index: {}]
  %s2 = inlined_call_operand.vmem [shape: bf16[128,128], index: 2, kind: input, shape index: {}]
  %s3 = inlined_call_operand.vmem [shape: bf16[128,128], index: 3, kind: input, shape index: {}]
  %s4 = inlined_call_operand.vmem [shape: bf16[128,128], index: 4, kind: input, shape index: {}]
  %s5 = inlined_call_operand.vmem [shape: bf16[208,128], index: 5, kind: output, shape index: {}]
  %s6 = sld [smem:[#allocation0]]
  $region30: #{net_forward.1} parent=0
    _
  %s8 = ssub.s32 1, %s6
  %s9 = scalar_select 0, %s8, %s6
  // Predicated region
  $region2: #{net_forward.1} parent=0 // pred_check
    _
  $region3: #{net_forward.1} parent=0 // pred_check_branch
    %11 = sbr.rel (0) target = $region5
  $region4: #{net_forward.1} parent=0 // pred_region
    _
  $region5: #{net_forward.1} parent=0 // pred_fallthru
    _
  // Predicated region
  $region6: #{net_forward.1} parent=0 // pred_check
    _
  $region7: #{net_forward.1} parent=0 // pred_check_branch
    %13 = sbr.rel (0) target = $region9
  $region8: #{net_forward.1} parent=0 // pred_region
    _
  $region9: #{net_forward.1} parent=0 // pred_fallthru
    _
  // Predicated region
  $region10: #{net_forward.1} parent=0 // pred_check
    _
  $region11: #{net_forward.1} parent=0 // pred_check_branch
    %15 = sbr.rel (0) target = $region13
  $region12: #{net_forward.1} parent=0 // pred_region
    _
  $region13: #{net_forward.1} parent=0 // pred_fallthru
    _
  // Predicated region
  $region14: #{net_forward.1} parent=0 // pred_check
    _
  $region15: #{net_forward.1} parent=0 // pred_check_branch
    %17 = sbr.rel (0) target = $region17
  $region16: #{net_forward.1} parent=0 // pred_region
    _
  $region17: #{net_forward.1} parent=0 // pred_fallthru
    _
  // Predicated region
  $region18: #{net_forward.1} parent=0 // pred_check
    _
  $region19: #{net_forward.1} parent=0 // pred_check_branch
    %19 = sbr.rel (0) target = $region21
  $region20: #{net_forward.1} parent=0 // pred_region
    _
  $region21: #{net_forward.1} parent=0 // pred_fallthru
    _
  %v21 = vld [vmem:[%s0] sm:$0xff]
  %v22 = vld [vmem:[%s0 + $0x8] sm:$0xff]
  %v23 = vld [vmem:[%s0 + $0x10] sm:$0xff]
  %v24 = vld [vmem:[%s0 + $0x18] sm:$0xff]
  %v25 = vld [vmem:[%s0 + $0x20] sm:$0xff]
  %v26 = vld [vmem:[%s0 + $0x28] sm:$0xff]
  %v27 = vld [vmem:[%s0 + $0x30] sm:$0xff]
  %v28 = vld [vmem:[%s0 + $0x38] sm:$0xff]
  %v29 = vld [vmem:[%s0 + $0x40] sm:$0xff]
  %v30 = vld [vmem:[%s0 + $0x48] sm:$0xff]
  %v31 = vld [vmem:[%s0 + $0x50] sm:$0xff]
  %v32 = vld [vmem:[%s0 + $0x58] sm:$0xff]
  %v33 = vld [vmem:[%s0 + $0x60] sm:$0xff]
  %v34 = vld [vmem:[%s0 + $0x68] sm:$0xff]
  %v35 = vld [vmem:[%s0 + $0x70] sm:$0xff]
  %v36 = vld [vmem:[%s0 + $0x78] sm:$0xff]
  %v37 = vld [vmem:[%s0 + $0x80] sm:$0xff]
  %v38 = vld [vmem:[%s0 + $0x88] sm:$0xff]
  %v39 = vld [vmem:[%s0 + $0x90] sm:$0xff]
  %v40 = vld [vmem:[%s0 + $0x98] sm:$0xff]
  %v41 = vld [vmem:[%s0 + $0xa0] sm:$0xff]
  %v42 = vld [vmem:[%s0 + $0xa8] sm:$0xff]
  %v43 = vld [vmem:[%s0 + $0xb0] sm:$0xff]
  %v44 = vld [vmem:[%s0 + $0xb8] sm:$0xff]
  %v45 = vld [vmem:[%s0 + $0xc0] sm:$0xff]
  %v46 = vld [vmem:[%s0 + $0xc8] sm:$0xff]
  %v47 = vpack.c.bf16 %v22, %v21
  %v48 = vpack.c.bf16 %v24, %v23
  %v49 = vpack.c.bf16 %v26, %v25
  %v50 = vpack.c.bf16 %v28, %v27
  %v51 = vpack.c.bf16 %v30, %v29
  %v52 = vpack.c.bf16 %v32, %v31
  %v53 = vpack.c.bf16 %v34, %v33
  %v54 = vpack.c.bf16 %v36, %v35
  %v55 = vpack.c.bf16 %v38, %v37
  %v56 = vpack.c.bf16 %v40, %v39
  %v57 = vpack.c.bf16 %v42, %v41
  %v58 = vpack.c.bf16 %v44, %v43
  %v59 = vpack.c.bf16 %v46, %v45
  %v60 = vld [vmem:[%s1] sm:$0xf]
  %v61 = vld [vmem:[%s1 + $0x4] sm:$0xf]
  %v64 = vunpack.c.l.b16 %v60
  %v65 = vunpack.c.l.b16 %v61
  %v66 = vpack.c.b16 %v65, %v64
  %vm68 = vcmask 130048
  %v70 = vsel %vm68, %v47, 0
  %v73 = vsel %vm68, %v48, 0
  %v76 = vsel %vm68, %v49, 0
  %v79 = vsel %vm68, %v50, 0
  %v82 = vsel %vm68, %v51, 0
  %v85 = vsel %vm68, %v52, 0
  %v88 = vsel %vm68, %v53, 0
  %v91 = vsel %vm68, %v54, 0
  %v94 = vsel %vm68, %v55, 0
  %v97 = vsel %vm68, %v56, 0
  %v100 = vsel %vm68, %v57, 0
  %v103 = vsel %vm68, %v58, 0
  %v106 = vsel %vm68, %v59, 0
  %108 = vmatprep.subr.bf16.mxu0 0
  %109 = vmatpush1.bf16.msra.mxu0 %v66
  %110 = vmatprep.subr.bf16.mxu0 0
  %111 = vmatpush1.bf16.msra.mxu0 0
  %112 = vmatprep.subr.bf16.mxu0 0
  %113 = vmatpush1.bf16.msra.mxu0 0
  %114 = vmatprep.subr.bf16.mxu0 0
  %115 = vmatpush1.bf16.msra.mxu0 0
  %116 = vmatprep.subr.bf16.mxu0 0
  %117 = vmatpush1.bf16.msra.mxu0 0
  %118 = vmatprep.subr.bf16.mxu0 0
  %119 = vmatpush1.bf16.msra.mxu0 0
  %120 = vmatprep.subr.bf16.mxu0 0
  %121 = vmatpush1.bf16.msra.mxu0 0
  %122 = vmatprep.subr.bf16.mxu0 0
  %123 = vmatpush1.bf16.msra.mxu0 0
  %124 = vmatprep.subr.bf16.mxu0 0
  %125 = vmatpush1.bf16.msra.mxu0 0
  %126 = vmatprep.subr.bf16.mxu0 0
  %127 = vmatpush1.bf16.msra.mxu0 0
  %128 = vmatprep.subr.bf16.mxu0 0
  %129 = vmatpush1.bf16.msra.mxu0 0
  %130 = vmatprep.subr.bf16.mxu0 0
  %131 = vmatpush1.bf16.msra.mxu0 0
  %132 = vmatprep.subr.bf16.mxu0 0
  %133 = vmatpush1.bf16.msra.mxu0 0
  %134 = vmatprep.subr.bf16.mxu0 0
  %135 = vmatpush1.bf16.msra.mxu0 0
  %136 = vmatprep.subr.bf16.mxu0 0
  %137 = vmatpush1.bf16.msra.mxu0 0
  %138 = vmatprep.subr.bf16.mxu0 0
  %139 = vmatpush1.bf16.msra.mxu0 0
  %140 = vmatprep.mubr.bf16.mxu0 0
  %141 = vmatmul.mubr.bf16.gmra.mrb[0].mxu0 %v70
  %v142 = vpop.f32.mrb[0].mxu0
  %v143 = vadd.f32 0.0, %v142
  %v144 = vpop.f32.mrb[0].mxu0
  %v145 = vpop.f32.mrb[0].mxu0
  %v146 = vadd.f32 0.0, %v145
  %v147 = vpop.f32.mrb[0].mxu0
  %148 = vmatprep.mubr.bf16.mxu0 0
  %149 = vmatmul.mubr.bf16.gmra.mrb[0].mxu0 %v73
  %v150 = vpop.f32.mrb[0].mxu0
  %v151 = vadd.f32 0.0, %v150
  %v152 = vpop.f32.mrb[0].mxu0
  %v153 = vpop.f32.mrb[0].mxu0
  %v154 = vadd.f32 0.0, %v153
  %v155 = vpop.f32.mrb[0].mxu0
  %156 = vmatprep.mubr.bf16.mxu0 0
  %157 = vmatmul.mubr.bf16.gmra.mrb[0].mxu0 %v76
  %v158 = vpop.f32.mrb[0].mxu0
  %v159 = vadd.f32 0.0, %v158
  %v160 = vpop.f32.mrb[0].mxu0
  %v161 = vpop.f32.mrb[0].mxu0
  %v162 = vadd.f32 0.0, %v161
  %v163 = vpop.f32.mrb[0].mxu0
  %164 = vmatprep.mubr.bf16.mxu0 0
  %165 = vmatmul.mubr.bf16.gmra.mrb[0].mxu0 %v79
  %v166 = vpop.f32.mrb[0].mxu0
  %v167 = vadd.f32 0.0, %v166
  %v168 = vpop.f32.mrb[0].mxu0
  %v169 = vpop.f32.mrb[0].mxu0
  %v170 = vadd.f32 0.0, %v169
  %v171 = vpop.f32.mrb[0].mxu0
  %172 = vmatprep.mubr.bf16.mxu0 0
  %173 = vmatmul.mubr.bf16.gmra.mrb[0].mxu0 %v82
  %v174 = vpop.f32.mrb[0].mxu0
  %v175 = vadd.f32 0.0, %v174
  %v176 = vpop.f32.mrb[0].mxu0
  %v177 = vpop.f32.mrb[0].mxu0
  %v178 = vadd.f32 0.0, %v177
  %v179 = vpop.f32.mrb[0].mxu0
  %180 = vmatprep.mubr.bf16.mxu0 0
  %181 = vmatmul.mubr.bf16.gmra.mrb[0].mxu0 %v85
  %v182 = vpop.f32.mrb[0].mxu0
  %v183 = vadd.f32 0.0, %v182
  %v184 = vpop.f32.mrb[0].mxu0
  %v185 = vpop.f32.mrb[0].mxu0
  %v186 = vadd.f32 0.0, %v185
  %v187 = vpop.f32.mrb[0].mxu0
  %188 = vmatprep.mubr.bf16.mxu0 0
  %189 = vmatmul.mubr.bf16.gmra.mrb[0].mxu0 %v88
  %v190 = vpop.f32.mrb[0].mxu0
  %v191 = vadd.f32 0.0, %v190
  %v192 = vpop.f32.mrb[0].mxu0
  %v193 = vpop.f32.mrb[0].mxu0
  %v194 = vadd.f32 0.0, %v193
  %v195 = vpop.f32.mrb[0].mxu0
  %196 = vmatprep.mubr.bf16.mxu0 0
  %197 = vmatmul.mubr.bf16.gmra.mrb[0].mxu0 %v91
  %v198 = vpop.f32.mrb[0].mxu0
  %v199 = vadd.f32 0.0, %v198
  %v200 = vpop.f32.mrb[0].mxu0
  %v201 = vpop.f32.mrb[0].mxu0
  %v202 = vadd.f32 0.0, %v201
  %v203 = vpop.f32.mrb[0].mxu0
  %204 = vmatprep.mubr.bf16.mxu0 0
  %205 = vmatmul.mubr.bf16.gmra.mrb[0].mxu0 %v94
  %v206 = vpop.f32.mrb[0].mxu0
  %v207 = vadd.f32 0.0, %v206
  %v208 = vpop.f32.mrb[0].mxu0
  %v209 = vpop.f32.mrb[0].mxu0
  %v210 = vadd.f32 0.0, %v209
  %v211 = vpop.f32.mrb[0].mxu0
  %212 = vmatprep.mubr.bf16.mxu0 0
  %213 = vmatmul.mubr.bf16.gmra.mrb[0].mxu0 %v97
  %v214 = vpop.f32.mrb[0].mxu0
  %v215 = vadd.f32 0.0, %v214
  %v216 = vpop.f32.mrb[0].mxu0
  %v217 = vpop.f32.mrb[0].mxu0
  %v218 = vadd.f32 0.0, %v217
  %v219 = vpop.f32.mrb[0].mxu0
  %220 = vmatprep.mubr.bf16.mxu0 0
  %221 = vmatmul.mubr.bf16.gmra.mrb[0].mxu0 %v100
  %v222 = vpop.f32.mrb[0].mxu0
  %v223 = vadd.f32 0.0, %v222
  %v224 = vpop.f32.mrb[0].mxu0
  %v225 = vpop.f32.mrb[0].mxu0
  %v226 = vadd.f32 0.0, %v225
  %v227 = vpop.f32.mrb[0].mxu0
  %228 = vmatprep.mubr.bf16.mxu0 0
  %229 = vmatmul.mubr.bf16.gmra.mrb[0].mxu0 %v103
  %v230 = vpop.f32.mrb[0].mxu0
  %v231 = vadd.f32 0.0, %v230
  %v232 = vpop.f32.mrb[0].mxu0
  %v233 = vpop.f32.mrb[0].mxu0
  %v234 = vadd.f32 0.0, %v233
  %v235 = vpop.f32.mrb[0].mxu0
  %236 = vmatprep.mubr.bf16.mxu0 0
  %237 = vmatmul.mubr.bf16.gmra.mrb[0].mxu0 %v106
  %v238 = vpop.f32.mrb[0].mxu0
  %v239 = vadd.f32 0.0, %v238
  %v240 = vpop.f32.mrb[0].mxu0
  %v241 = vpop.f32.mrb[0].mxu0
  %v242 = vadd.f32 0.0, %v241
  %v243 = vpop.f32.mrb[0].mxu0
  %244 = vdwg.mxu0
  %v245 = vmax.f32 %v143, 0.0
  %v246 = vmax.f32 %v146, 0.0
  %v247 = vmax.f32 %v151, 0.0
  %v248 = vmax.f32 %v154, 0.0
  %v249 = vmax.f32 %v159, 0.0
  %v250 = vmax.f32 %v162, 0.0
  %v251 = vmax.f32 %v167, 0.0
  %v252 = vmax.f32 %v170, 0.0
  %v253 = vmax.f32 %v175, 0.0
  %v254 = vmax.f32 %v178, 0.0
  %v255 = vmax.f32 %v183, 0.0
  %v256 = vmax.f32 %v186, 0.0
  %v257 = vmax.f32 %v191, 0.0
  %v258 = vmax.f32 %v194, 0.0
  %v259 = vmax.f32 %v199, 0.0
  %v260 = vmax.f32 %v202, 0.0
  %v261 = vmax.f32 %v207, 0.0
  %v262 = vmax.f32 %v210, 0.0
  %v263 = vmax.f32 %v215, 0.0
  %v264 = vmax.f32 %v218, 0.0
  %v265 = vmax.f32 %v223, 0.0
  %v266 = vmax.f32 %v226, 0.0
  %v267 = vmax.f32 %v231, 0.0
  %v268 = vmax.f32 %v234, 0.0
  %v269 = vmax.f32 %v239, 0.0
  %v270 = vmax.f32 %v242, 0.0
  %v271 = vpack.c.bf16 %v246, %v245
  %v272 = vpack.c.bf16 %v248, %v247
  %v273 = vpack.c.bf16 %v250, %v249
  %v274 = vpack.c.bf16 %v252, %v251
  %v275 = vpack.c.bf16 %v254, %v253
  %v276 = vpack.c.bf16 %v256, %v255
  %v277 = vpack.c.bf16 %v258, %v257
  %v278 = vpack.c.bf16 %v260, %v259
  %v279 = vpack.c.bf16 %v262, %v261
  %v280 = vpack.c.bf16 %v264, %v263
  %v281 = vpack.c.bf16 %v266, %v265
  %v282 = vpack.c.bf16 %v268, %v267
  %v283 = vpack.c.bf16 %v270, %v269
  %v284 = vld [vmem:[%s2] sm:$0xf]
  %v285 = vld [vmem:[%s2 + $0x4] sm:$0xf]
  %v286 = vld [vmem:[%s2 + $0x8] sm:$0xf]
  %v287 = vld [vmem:[%s2 + $0xc] sm:$0xf]
  %v288 = vld [vmem:[%s2 + $0x10] sm:$0xf]
  %v289 = vld [vmem:[%s2 + $0x14] sm:$0xf]
  %v290 = vld [vmem:[%s2 + $0x18] sm:$0xf]
  %v291 = vld [vmem:[%s2 + $0x1c] sm:$0xf]
  %v292 = vld [vmem:[%s2 + $0x20] sm:$0xf]
  %v293 = vld [vmem:[%s2 + $0x24] sm:$0xf]
  %v294 = vld [vmem:[%s2 + $0x28] sm:$0xf]
  %v295 = vld [vmem:[%s2 + $0x2c] sm:$0xf]
  %v296 = vld [vmem:[%s2 + $0x30] sm:$0xf]
  %v297 = vld [vmem:[%s2 + $0x34] sm:$0xf]
  %v298 = vld [vmem:[%s2 + $0x38] sm:$0xf]
  %v299 = vld [vmem:[%s2 + $0x3c] sm:$0xf]
  %v316 = vunpack.c.l.b16 %v284
  %v317 = vunpack.c.l.b16 %v285
  %v318 = vunpack.c.l.b16 %v286
  %v319 = vunpack.c.l.b16 %v287
  %v320 = vunpack.c.l.b16 %v288
  %v321 = vunpack.c.l.b16 %v289
  %v322 = vunpack.c.l.b16 %v290
  %v323 = vunpack.c.l.b16 %v291
  %v324 = vunpack.c.l.b16 %v292
  %v325 = vunpack.c.l.b16 %v293
  %v326 = vunpack.c.l.b16 %v294
  %v327 = vunpack.c.l.b16 %v295
  %v328 = vunpack.c.l.b16 %v296
  %v329 = vunpack.c.l.b16 %v297
  %v330 = vunpack.c.l.b16 %v298
  %v331 = vunpack.c.l.b16 %v299
  %v332 = vpack.c.b16 %v317, %v316
  %v333 = vpack.c.b16 %v319, %v318
  %v334 = vpack.c.b16 %v321, %v320
  %v335 = vpack.c.b16 %v323, %v322
  %v336 = vpack.c.b16 %v325, %v324
  %v337 = vpack.c.b16 %v327, %v326
  %v338 = vpack.c.b16 %v329, %v328
  %v339 = vpack.c.b16 %v331, %v330
  %348 = vmatprep.subr.bf16.mxu0 0
  %349 = vmatpush1.bf16.msra.mxu0 %v332
  %350 = vmatprep.subr.bf16.mxu0 0
  %351 = vmatpush1.bf16.msra.mxu0 %v333
  %352 = vmatprep.subr.bf16.mxu0 0
  %353 = vmatpush1.bf16.msra.mxu0 %v334
  %354 = vmatprep.subr.bf16.mxu0 0
  %355 = vmatpush1.bf16.msra.mxu0 %v335
  %356 = vmatprep.subr.bf16.mxu0 0
  %357 = vmatpush1.bf16.msra.mxu0 %v336
  %358 = vmatprep.subr.bf16.mxu0 0
  %359 = vmatpush1.bf16.msra.mxu0 %v337
  %360 = vmatprep.subr.bf16.mxu0 0
  %361 = vmatpush1.bf16.msra.mxu0 %v338
  %362 = vmatprep.subr.bf16.mxu0 0
  %363 = vmatpush1.bf16.msra.mxu0 %v339
  %364 = vmatprep.subr.bf16.mxu0 0
  %365 = vmatpush1.bf16.msra.mxu0 0
  %366 = vmatprep.subr.bf16.mxu0 0
  %367 = vmatpush1.bf16.msra.mxu0 0
  %368 = vmatprep.subr.bf16.mxu0 0
  %369 = vmatpush1.bf16.msra.mxu0 0
  %370 = vmatprep.subr.bf16.mxu0 0
  %371 = vmatpush1.bf16.msra.mxu0 0
  %372 = vmatprep.subr.bf16.mxu0 0
  %373 = vmatpush1.bf16.msra.mxu0 0
  %374 = vmatprep.subr.bf16.mxu0 0
  %375 = vmatpush1.bf16.msra.mxu0 0
  %376 = vmatprep.subr.bf16.mxu0 0
  %377 = vmatpush1.bf16.msra.mxu0 0
  %378 = vmatprep.subr.bf16.mxu0 0
  %379 = vmatpush1.bf16.msra.mxu0 0
  %380 = vmatprep.mubr.bf16.mxu0 0
  %381 = vmatmul.mubr.bf16.gmra.mrb[0].mxu0 %v271
  %v382 = vpop.f32.mrb[0].mxu0
  %v383 = vadd.f32 0.0, %v382
  %v384 = vpop.f32.mrb[0].mxu0
  %v385 = vpop.f32.mrb[0].mxu0
  %v386 = vadd.f32 0.0, %v385
  %v387 = vpop.f32.mrb[0].mxu0
  %388 = vmatprep.mubr.bf16.mxu0 0
  %389 = vmatmul.mubr.bf16.gmra.mrb[0].mxu0 %v272
  %v390 = vpop.f32.mrb[0].mxu0
  %v391 = vadd.f32 0.0, %v390
  %v392 = vpop.f32.mrb[0].mxu0
  %v393 = vpop.f32.mrb[0].mxu0
  %v394 = vadd.f32 0.0, %v393
  %v395 = vpop.f32.mrb[0].mxu0
  %396 = vmatprep.mubr.bf16.mxu0 0
  %397 = vmatmul.mubr.bf16.gmra.mrb[0].mxu0 %v273
  %v398 = vpop.f32.mrb[0].mxu0
  %v399 = vadd.f32 0.0, %v398
  %v400 = vpop.f32.mrb[0].mxu0
  %v401 = vpop.f32.mrb[0].mxu0
  %v402 = vadd.f32 0.0, %v401
  %v403 = vpop.f32.mrb[0].mxu0
  %404 = vmatprep.mubr.bf16.mxu0 0
  %405 = vmatmul.mubr.bf16.gmra.mrb[0].mxu0 %v274
  %v406 = vpop.f32.mrb[0].mxu0
  %v407 = vadd.f32 0.0, %v406
  %v408 = vpop.f32.mrb[0].mxu0
  %v409 = vpop.f32.mrb[0].mxu0
  %v410 = vadd.f32 0.0, %v409
  %v411 = vpop.f32.mrb[0].mxu0
  %412 = vmatprep.mubr.bf16.mxu0 0
  %413 = vmatmul.mubr.bf16.gmra.mrb[0].mxu0 %v275
  %v414 = vpop.f32.mrb[0].mxu0
  %v415 = vadd.f32 0.0, %v414
  %v416 = vpop.f32.mrb[0].mxu0
  %v417 = vpop.f32.mrb[0].mxu0
  %v418 = vadd.f32 0.0, %v417
  %v419 = vpop.f32.mrb[0].mxu0
  %420 = vmatprep.mubr.bf16.mxu0 0
  %421 = vmatmul.mubr.bf16.gmra.mrb[0].mxu0 %v276
  %v422 = vpop.f32.mrb[0].mxu0
  %v423 = vadd.f32 0.0, %v422
  %v424 = vpop.f32.mrb[0].mxu0
  %v425 = vpop.f32.mrb[0].mxu0
  %v426 = vadd.f32 0.0, %v425
  %v427 = vpop.f32.mrb[0].mxu0
  %428 = vmatprep.mubr.bf16.mxu0 0
  %429 = vmatmul.mubr.bf16.gmra.mrb[0].mxu0 %v277
  %v430 = vpop.f32.mrb[0].mxu0
  %v431 = vadd.f32 0.0, %v430
  %v432 = vpop.f32.mrb[0].mxu0
  %v433 = vpop.f32.mrb[0].mxu0
  %v434 = vadd.f32 0.0, %v433
  %v435 = vpop.f32.mrb[0].mxu0
  %436 = vmatprep.mubr.bf16.mxu0 0
  %437 = vmatmul.mubr.bf16.gmra.mrb[0].mxu0 %v278
  %v438 = vpop.f32.mrb[0].mxu0
  %v439 = vadd.f32 0.0, %v438
  %v440 = vpop.f32.mrb[0].mxu0
  %v441 = vpop.f32.mrb[0].mxu0
  %v442 = vadd.f32 0.0, %v441
  %v443 = vpop.f32.mrb[0].mxu0
  %444 = vmatprep.mubr.bf16.mxu0 0
  %445 = vmatmul.mubr.bf16.gmra.mrb[0].mxu0 %v279
  %v446 = vpop.f32.mrb[0].mxu0
  %v447 = vadd.f32 0.0, %v446
  %v448 = vpop.f32.mrb[0].mxu0
  %v449 = vpop.f32.mrb[0].mxu0
  %v450 = vadd.f32 0.0, %v449
  %v451 = vpop.f32.mrb[0].mxu0
  %452 = vmatprep.mubr.bf16.mxu0 0
  %453 = vmatmul.mubr.bf16.gmra.mrb[0].mxu0 %v280
  %v454 = vpop.f32.mrb[0].mxu0
  %v455 = vadd.f32 0.0, %v454
  %v456 = vpop.f32.mrb[0].mxu0
  %v457 = vpop.f32.mrb[0].mxu0
  %v458 = vadd.f32 0.0, %v457
  %v459 = vpop.f32.mrb[0].mxu0
  %460 = vmatprep.mubr.bf16.mxu0 0
  %461 = vmatmul.mubr.bf16.gmra.mrb[0].mxu0 %v281
  %v462 = vpop.f32.mrb[0].mxu0
  %v463 = vadd.f32 0.0, %v462
  %v464 = vpop.f32.mrb[0].mxu0
  %v465 = vpop.f32.mrb[0].mxu0
  %v466 = vadd.f32 0.0, %v465
  %v467 = vpop.f32.mrb[0].mxu0
  %468 = vmatprep.mubr.bf16.mxu0 0
  %469 = vmatmul.mubr.bf16.gmra.mrb[0].mxu0 %v282
  %v470 = vpop.f32.mrb[0].mxu0
  %v471 = vadd.f32 0.0, %v470
  %v472 = vpop.f32.mrb[0].mxu0
  %v473 = vpop.f32.mrb[0].mxu0
  %v474 = vadd.f32 0.0, %v473
  %v475 = vpop.f32.mrb[0].mxu0
  %476 = vmatprep.mubr.bf16.mxu0 0
  %477 = vmatmul.mubr.bf16.gmra.mrb[0].mxu0 %v283
  %v478 = vpop.f32.mrb[0].mxu0
  %v479 = vadd.f32 0.0, %v478
  %v480 = vpop.f32.mrb[0].mxu0
  %v481 = vpop.f32.mrb[0].mxu0
  %v482 = vadd.f32 0.0, %v481
  %v483 = vpop.f32.mrb[0].mxu0
  %484 = vdwg.mxu0
  %v485 = vmax.f32 %v383, 0.0
  %v486 = vmax.f32 %v386, 0.0
  %v487 = vmax.f32 %v391, 0.0
  %v488 = vmax.f32 %v394, 0.0
  %v489 = vmax.f32 %v399, 0.0
  %v490 = vmax.f32 %v402, 0.0
  %v491 = vmax.f32 %v407, 0.0
  %v492 = vmax.f32 %v410, 0.0
  %v493 = vmax.f32 %v415, 0.0
  %v494 = vmax.f32 %v418, 0.0
  %v495 = vmax.f32 %v423, 0.0
  %v496 = vmax.f32 %v426, 0.0
  %v497 = vmax.f32 %v431, 0.0
  %v498 = vmax.f32 %v434, 0.0
  %v499 = vmax.f32 %v439, 0.0
  %v500 = vmax.f32 %v442, 0.0
  %v501 = vmax.f32 %v447, 0.0
  %v502 = vmax.f32 %v450, 0.0
  %v503 = vmax.f32 %v455, 0.0
  %v504 = vmax.f32 %v458, 0.0
  %v505 = vmax.f32 %v463, 0.0
  %v506 = vmax.f32 %v466, 0.0
  %v507 = vmax.f32 %v471, 0.0
  %v508 = vmax.f32 %v474, 0.0
  %v509 = vmax.f32 %v479, 0.0
  %v510 = vmax.f32 %v482, 0.0
  %v511 = vpack.c.bf16 %v486, %v485
  %v512 = vpack.c.bf16 %v488, %v487
  %v513 = vpack.c.bf16 %v490, %v489
  %v514 = vpack.c.bf16 %v492, %v491
  %v515 = vpack.c.bf16 %v494, %v493
  %v516 = vpack.c.bf16 %v496, %v495
  %v517 = vpack.c.bf16 %v498, %v497
  %v518 = vpack.c.bf16 %v500, %v499
  %v519 = vpack.c.bf16 %v502, %v501
  %v520 = vpack.c.bf16 %v504, %v503
  %v521 = vpack.c.bf16 %v506, %v505
  %v522 = vpack.c.bf16 %v508, %v507
  %v523 = vpack.c.bf16 %v510, %v509
  %v524 = vld [vmem:[%s3] sm:$0xf]
  %v525 = vld [vmem:[%s3 + $0x4] sm:$0xf]
  %v526 = vld [vmem:[%s3 + $0x8] sm:$0xf]
  %v527 = vld [vmem:[%s3 + $0xc] sm:$0xf]
  %v528 = vld [vmem:[%s3 + $0x10] sm:$0xf]
  %v529 = vld [vmem:[%s3 + $0x14] sm:$0xf]
  %v530 = vld [vmem:[%s3 + $0x18] sm:$0xf]
  %v531 = vld [vmem:[%s3 + $0x1c] sm:$0xf]
  %v532 = vld [vmem:[%s3 + $0x20] sm:$0xf]
  %v533 = vld [vmem:[%s3 + $0x24] sm:$0xf]
  %v534 = vld [vmem:[%s3 + $0x28] sm:$0xf]
  %v535 = vld [vmem:[%s3 + $0x2c] sm:$0xf]
  %v536 = vld [vmem:[%s3 + $0x30] sm:$0xf]
  %v537 = vld [vmem:[%s3 + $0x34] sm:$0xf]
  %v538 = vld [vmem:[%s3 + $0x38] sm:$0xf]
  %v539 = vld [vmem:[%s3 + $0x3c] sm:$0xf]
  %v556 = vunpack.c.l.b16 %v524
  %v557 = vunpack.c.l.b16 %v525
  %v558 = vunpack.c.l.b16 %v526
  %v559 = vunpack.c.l.b16 %v527
  %v560 = vunpack.c.l.b16 %v528
  %v561 = vunpack.c.l.b16 %v529
  %v562 = vunpack.c.l.b16 %v530
  %v563 = vunpack.c.l.b16 %v531
  %v564 = vunpack.c.l.b16 %v532
  %v565 = vunpack.c.l.b16 %v533
  %v566 = vunpack.c.l.b16 %v534
  %v567 = vunpack.c.l.b16 %v535
  %v568 = vunpack.c.l.b16 %v536
  %v569 = vunpack.c.l.b16 %v537
  %v570 = vunpack.c.l.b16 %v538
  %v571 = vunpack.c.l.b16 %v539
  %v572 = vpack.c.b16 %v557, %v556
  %v573 = vpack.c.b16 %v559, %v558
  %v574 = vpack.c.b16 %v561, %v560
  %v575 = vpack.c.b16 %v563, %v562
  %v576 = vpack.c.b16 %v565, %v564
  %v577 = vpack.c.b16 %v567, %v566
  %v578 = vpack.c.b16 %v569, %v568
  %v579 = vpack.c.b16 %v571, %v570
  %588 = vmatprep.subr.bf16.mxu0 0
  %589 = vmatpush1.bf16.msra.mxu0 %v572
  %590 = vmatprep.subr.bf16.mxu0 0
  %591 = vmatpush1.bf16.msra.mxu0 %v573
  %592 = vmatprep.subr.bf16.mxu0 0
  %593 = vmatpush1.bf16.msra.mxu0 %v574
  %594 = vmatprep.subr.bf16.mxu0 0
  %595 = vmatpush1.bf16.msra.mxu0 %v575
  %596 = vmatprep.subr.bf16.mxu0 0
  %597 = vmatpush1.bf16.msra.mxu0 %v576
  %598 = vmatprep.subr.bf16.mxu0 0
  %599 = vmatpush1.bf16.msra.mxu0 %v577
  %600 = vmatprep.subr.bf16.mxu0 0
  %601 = vmatpush1.bf16.msra.mxu0 %v578
  %602 = vmatprep.subr.bf16.mxu0 0
  %603 = vmatpush1.bf16.msra.mxu0 %v579
  %604 = vmatprep.subr.bf16.mxu0 0
  %605 = vmatpush1.bf16.msra.mxu0 0
  %606 = vmatprep.subr.bf16.mxu0 0
  %607 = vmatpush1.bf16.msra.mxu0 0
  %608 = vmatprep.subr.bf16.mxu0 0
  %609 = vmatpush1.bf16.msra.mxu0 0
  %610 = vmatprep.subr.bf16.mxu0 0
  %611 = vmatpush1.bf16.msra.mxu0 0
  %612 = vmatprep.subr.bf16.mxu0 0
  %613 = vmatpush1.bf16.msra.mxu0 0
  %614 = vmatprep.subr.bf16.mxu0 0
  %615 = vmatpush1.bf16.msra.mxu0 0
  %616 = vmatprep.subr.bf16.mxu0 0
  %617 = vmatpush1.bf16.msra.mxu0 0
  %618 = vmatprep.subr.bf16.mxu0 0
  %619 = vmatpush1.bf16.msra.mxu0 0
  %620 = vmatprep.mubr.bf16.mxu0 0
  %621 = vmatmul.mubr.bf16.gmra.mrb[0].mxu0 %v511
  %v622 = vpop.f32.mrb[0].mxu0
  %v623 = vadd.f32 0.0, %v622
  %v624 = vpop.f32.mrb[0].mxu0
  %v625 = vpop.f32.mrb[0].mxu0
  %v626 = vadd.f32 0.0, %v625
  %v627 = vpop.f32.mrb[0].mxu0
  %628 = vmatprep.mubr.bf16.mxu0 0
  %629 = vmatmul.mubr.bf16.gmra.mrb[0].mxu0 %v512
  %v630 = vpop.f32.mrb[0].mxu0
  %v631 = vadd.f32 0.0, %v630
  %v632 = vpop.f32.mrb[0].mxu0
  %v633 = vpop.f32.mrb[0].mxu0
  %v634 = vadd.f32 0.0, %v633
  %v635 = vpop.f32.mrb[0].mxu0
  %636 = vmatprep.mubr.bf16.mxu0 0
  %637 = vmatmul.mubr.bf16.gmra.mrb[0].mxu0 %v513
  %v638 = vpop.f32.mrb[0].mxu0
  %v639 = vadd.f32 0.0, %v638
  %v640 = vpop.f32.mrb[0].mxu0
  %v641 = vpop.f32.mrb[0].mxu0
  %v642 = vadd.f32 0.0, %v641
  %v643 = vpop.f32.mrb[0].mxu0
  %644 = vmatprep.mubr.bf16.mxu0 0
  %645 = vmatmul.mubr.bf16.gmra.mrb[0].mxu0 %v514
  %v646 = vpop.f32.mrb[0].mxu0
  %v647 = vadd.f32 0.0, %v646
  %v648 = vpop.f32.mrb[0].mxu0
  %v649 = vpop.f32.mrb[0].mxu0
  %v650 = vadd.f32 0.0, %v649
  %v651 = vpop.f32.mrb[0].mxu0
  %652 = vmatprep.mubr.bf16.mxu0 0
  %653 = vmatmul.mubr.bf16.gmra.mrb[0].mxu0 %v515
  %v654 = vpop.f32.mrb[0].mxu0
  %v655 = vadd.f32 0.0, %v654
  %v656 = vpop.f32.mrb[0].mxu0
  %v657 = vpop.f32.mrb[0].mxu0
  %v658 = vadd.f32 0.0, %v657
  %v659 = vpop.f32.mrb[0].mxu0
  %660 = vmatprep.mubr.bf16.mxu0 0
  %661 = vmatmul.mubr.bf16.gmra.mrb[0].mxu0 %v516
  %v662 = vpop.f32.mrb[0].mxu0
  %v663 = vadd.f32 0.0, %v662
  %v664 = vpop.f32.mrb[0].mxu0
  %v665 = vpop.f32.mrb[0].mxu0
  %v666 = vadd.f32 0.0, %v665
  %v667 = vpop.f32.mrb[0].mxu0
  %668 = vmatprep.mubr.bf16.mxu0 0
  %669 = vmatmul.mubr.bf16.gmra.mrb[0].mxu0 %v517
  %v670 = vpop.f32.mrb[0].mxu0
  %v671 = vadd.f32 0.0, %v670
  %v672 = vpop.f32.mrb[0].mxu0
  %v673 = vpop.f32.mrb[0].mxu0
  %v674 = vadd.f32 0.0, %v673
  %v675 = vpop.f32.mrb[0].mxu0
  %676 = vmatprep.mubr.bf16.mxu0 0
  %677 = vmatmul.mubr.bf16.gmra.mrb[0].mxu0 %v518
  %v678 = vpop.f32.mrb[0].mxu0
  %v679 = vadd.f32 0.0, %v678
  %v680 = vpop.f32.mrb[0].mxu0
  %v681 = vpop.f32.mrb[0].mxu0
  %v682 = vadd.f32 0.0, %v681
  %v683 = vpop.f32.mrb[0].mxu0
  %684 = vmatprep.mubr.bf16.mxu0 0
  %685 = vmatmul.mubr.bf16.gmra.mrb[0].mxu0 %v519
  %v686 = vpop.f32.mrb[0].mxu0
  %v687 = vadd.f32 0.0, %v686
  %v688 = vpop.f32.mrb[0].mxu0
  %v689 = vpop.f32.mrb[0].mxu0
  %v690 = vadd.f32 0.0, %v689
  %v691 = vpop.f32.mrb[0].mxu0
  %692 = vmatprep.mubr.bf16.mxu0 0
  %693 = vmatmul.mubr.bf16.gmra.mrb[0].mxu0 %v520
  %v694 = vpop.f32.mrb[0].mxu0
  %v695 = vadd.f32 0.0, %v694
  %v696 = vpop.f32.mrb[0].mxu0
  %v697 = vpop.f32.mrb[0].mxu0
  %v698 = vadd.f32 0.0, %v697
  %v699 = vpop.f32.mrb[0].mxu0
  %700 = vmatprep.mubr.bf16.mxu0 0
  %701 = vmatmul.mubr.bf16.gmra.mrb[0].mxu0 %v521
  %v702 = vpop.f32.mrb[0].mxu0
  %v703 = vadd.f32 0.0, %v702
  %v704 = vpop.f32.mrb[0].mxu0
  %v705 = vpop.f32.mrb[0].mxu0
  %v706 = vadd.f32 0.0, %v705
  %v707 = vpop.f32.mrb[0].mxu0
  %708 = vmatprep.mubr.bf16.mxu0 0
  %709 = vmatmul.mubr.bf16.gmra.mrb[0].mxu0 %v522
  %v710 = vpop.f32.mrb[0].mxu0
  %v711 = vadd.f32 0.0, %v710
  %v712 = vpop.f32.mrb[0].mxu0
  %v713 = vpop.f32.mrb[0].mxu0
  %v714 = vadd.f32 0.0, %v713
  %v715 = vpop.f32.mrb[0].mxu0
  %716 = vmatprep.mubr.bf16.mxu0 0
  %717 = vmatmul.mubr.bf16.gmra.mrb[0].mxu0 %v523
  %v718 = vpop.f32.mrb[0].mxu0
  %v719 = vadd.f32 0.0, %v718
  %v720 = vpop.f32.mrb[0].mxu0
  %v721 = vpop.f32.mrb[0].mxu0
  %v722 = vadd.f32 0.0, %v721
  %v723 = vpop.f32.mrb[0].mxu0
  %724 = vdwg.mxu0
  %v725 = vmax.f32 %v623, 0.0
  %v726 = vmax.f32 %v626, 0.0
  %v727 = vmax.f32 %v631, 0.0
  %v728 = vmax.f32 %v634, 0.0
  %v729 = vmax.f32 %v639, 0.0
  %v730 = vmax.f32 %v642, 0.0
  %v731 = vmax.f32 %v647, 0.0
  %v732 = vmax.f32 %v650, 0.0
  %v733 = vmax.f32 %v655, 0.0
  %v734 = vmax.f32 %v658, 0.0
  %v735 = vmax.f32 %v663, 0.0
  %v736 = vmax.f32 %v666, 0.0
  %v737 = vmax.f32 %v671, 0.0
  %v738 = vmax.f32 %v674, 0.0
  %v739 = vmax.f32 %v679, 0.0
  %v740 = vmax.f32 %v682, 0.0
  %v741 = vmax.f32 %v687, 0.0
  %v742 = vmax.f32 %v690, 0.0
  %v743 = vmax.f32 %v695, 0.0
  %v744 = vmax.f32 %v698, 0.0
  %v745 = vmax.f32 %v703, 0.0
  %v746 = vmax.f32 %v706, 0.0
  %v747 = vmax.f32 %v711, 0.0
  %v748 = vmax.f32 %v714, 0.0
  %v749 = vmax.f32 %v719, 0.0
  %v750 = vmax.f32 %v722, 0.0
  %v751 = vpack.c.bf16 %v726, %v725
  %v752 = vpack.c.bf16 %v728, %v727
  %v753 = vpack.c.bf16 %v730, %v729
  %v754 = vpack.c.bf16 %v732, %v731
  %v755 = vpack.c.bf16 %v734, %v733
  %v756 = vpack.c.bf16 %v736, %v735
  %v757 = vpack.c.bf16 %v738, %v737
  %v758 = vpack.c.bf16 %v740, %v739
  %v759 = vpack.c.bf16 %v742, %v741
  %v760 = vpack.c.bf16 %v744, %v743
  %v761 = vpack.c.bf16 %v746, %v745
  %v762 = vpack.c.bf16 %v748, %v747
  %v763 = vpack.c.bf16 %v750, %v749
  %v764 = vld [vmem:[%s4] sm:$0xf]
  %v765 = vld [vmem:[%s4 + $0x4] sm:$0xf]
  %v766 = vld [vmem:[%s4 + $0x8] sm:$0xf]
  %v767 = vld [vmem:[%s4 + $0xc] sm:$0xf]
  %v768 = vld [vmem:[%s4 + $0x10] sm:$0xf]
  %v769 = vld [vmem:[%s4 + $0x14] sm:$0xf]
  %v770 = vld [vmem:[%s4 + $0x18] sm:$0xf]
  %v771 = vld [vmem:[%s4 + $0x1c] sm:$0xf]
  %v772 = vld [vmem:[%s4 + $0x20] sm:$0xf]
  %v773 = vld [vmem:[%s4 + $0x24] sm:$0xf]
  %v774 = vld [vmem:[%s4 + $0x28] sm:$0xf]
  %v775 = vld [vmem:[%s4 + $0x2c] sm:$0xf]
  %v776 = vld [vmem:[%s4 + $0x30] sm:$0xf]
  %v777 = vld [vmem:[%s4 + $0x34] sm:$0xf]
  %v778 = vld [vmem:[%s4 + $0x38] sm:$0xf]
  %v779 = vld [vmem:[%s4 + $0x3c] sm:$0xf]
  %v796 = vunpack.c.l.b16 %v764
  %v797 = vunpack.c.l.b16 %v765
  %v798 = vunpack.c.l.b16 %v766
  %v799 = vunpack.c.l.b16 %v767
  %v800 = vunpack.c.l.b16 %v768
  %v801 = vunpack.c.l.b16 %v769
  %v802 = vunpack.c.l.b16 %v770
  %v803 = vunpack.c.l.b16 %v771
  %v804 = vunpack.c.l.b16 %v772
  %v805 = vunpack.c.l.b16 %v773
  %v806 = vunpack.c.l.b16 %v774
  %v807 = vunpack.c.l.b16 %v775
  %v808 = vunpack.c.l.b16 %v776
  %v809 = vunpack.c.l.b16 %v777
  %v810 = vunpack.c.l.b16 %v778
  %v811 = vunpack.c.l.b16 %v779
  %v812 = vpack.c.b16 %v797, %v796
  %v813 = vpack.c.b16 %v799, %v798
  %v814 = vpack.c.b16 %v801, %v800
  %v815 = vpack.c.b16 %v803, %v802
  %v816 = vpack.c.b16 %v805, %v804
  %v817 = vpack.c.b16 %v807, %v806
  %v818 = vpack.c.b16 %v809, %v808
  %v819 = vpack.c.b16 %v811, %v810
  %828 = vmatprep.subr.bf16.mxu0 0
  %829 = vmatpush1.bf16.msra.mxu0 %v812
  %830 = vmatprep.subr.bf16.mxu0 0
  %831 = vmatpush1.bf16.msra.mxu0 %v813
  %832 = vmatprep.subr.bf16.mxu0 0
  %833 = vmatpush1.bf16.msra.mxu0 %v814
  %834 = vmatprep.subr.bf16.mxu0 0
  %835 = vmatpush1.bf16.msra.mxu0 %v815
  %836 = vmatprep.subr.bf16.mxu0 0
  %837 = vmatpush1.bf16.msra.mxu0 %v816
  %838 = vmatprep.subr.bf16.mxu0 0
  %839 = vmatpush1.bf16.msra.mxu0 %v817
  %840 = vmatprep.subr.bf16.mxu0 0
  %841 = vmatpush1.bf16.msra.mxu0 %v818
  %842 = vmatprep.subr.bf16.mxu0 0
  %843 = vmatpush1.bf16.msra.mxu0 %v819
  %844 = vmatprep.subr.bf16.mxu0 0
  %845 = vmatpush1.bf16.msra.mxu0 0
  %846 = vmatprep.subr.bf16.mxu0 0
  %847 = vmatpush1.bf16.msra.mxu0 0
  %848 = vmatprep.subr.bf16.mxu0 0
  %849 = vmatpush1.bf16.msra.mxu0 0
  %850 = vmatprep.subr.bf16.mxu0 0
  %851 = vmatpush1.bf16.msra.mxu0 0
  %852 = vmatprep.subr.bf16.mxu0 0
  %853 = vmatpush1.bf16.msra.mxu0 0
  %854 = vmatprep.subr.bf16.mxu0 0
  %855 = vmatpush1.bf16.msra.mxu0 0
  %856 = vmatprep.subr.bf16.mxu0 0
  %857 = vmatpush1.bf16.msra.mxu0 0
  %858 = vmatprep.subr.bf16.mxu0 0
  %859 = vmatpush1.bf16.msra.mxu0 0
  %860 = vmatprep.mubr.bf16.mxu0 0
  %861 = vmatmul.mubr.bf16.gmra.mrb[0].mxu0 %v751
  %v862 = vpop.f32.mrb[0].mxu0
  %v863 = vadd.f32 0.0, %v862
  %v864 = vpop.f32.mrb[0].mxu0
  %v865 = vpop.f32.mrb[0].mxu0
  %v866 = vadd.f32 0.0, %v865
  %v867 = vpop.f32.mrb[0].mxu0
  %868 = vmatprep.mubr.bf16.mxu0 0
  %869 = vmatmul.mubr.bf16.gmra.mrb[0].mxu0 %v752
  %v870 = vpop.f32.mrb[0].mxu0
  %v871 = vadd.f32 0.0, %v870
  %v872 = vpop.f32.mrb[0].mxu0
  %v873 = vpop.f32.mrb[0].mxu0
  %v874 = vadd.f32 0.0, %v873
  %v875 = vpop.f32.mrb[0].mxu0
  %876 = vmatprep.mubr.bf16.mxu0 0
  %877 = vmatmul.mubr.bf16.gmra.mrb[0].mxu0 %v753
  %v878 = vpop.f32.mrb[0].mxu0
  %v879 = vadd.f32 0.0, %v878
  %v880 = vpop.f32.mrb[0].mxu0
  %v881 = vpop.f32.mrb[0].mxu0
  %v882 = vadd.f32 0.0, %v881
  %v883 = vpop.f32.mrb[0].mxu0
  %884 = vmatprep.mubr.bf16.mxu0 0
  %885 = vmatmul.mubr.bf16.gmra.mrb[0].mxu0 %v754
  %v886 = vpop.f32.mrb[0].mxu0
  %v887 = vadd.f32 0.0, %v886
  %v888 = vpop.f32.mrb[0].mxu0
  %v889 = vpop.f32.mrb[0].mxu0
  %v890 = vadd.f32 0.0, %v889
  %v891 = vpop.f32.mrb[0].mxu0
  %892 = vmatprep.mubr.bf16.mxu0 0
  %893 = vmatmul.mubr.bf16.gmra.mrb[0].mxu0 %v755
  %v894 = vpop.f32.mrb[0].mxu0
  %v895 = vadd.f32 0.0, %v894
  %v896 = vpop.f32.mrb[0].mxu0
  %v897 = vpop.f32.mrb[0].mxu0
  %v898 = vadd.f32 0.0, %v897
  %v899 = vpop.f32.mrb[0].mxu0
  %900 = vmatprep.mubr.bf16.mxu0 0
  %901 = vmatmul.mubr.bf16.gmra.mrb[0].mxu0 %v756
  %v902 = vpop.f32.mrb[0].mxu0
  %v903 = vadd.f32 0.0, %v902
  %v904 = vpop.f32.mrb[0].mxu0
  %v905 = vpop.f32.mrb[0].mxu0
  %v906 = vadd.f32 0.0, %v905
  %v907 = vpop.f32.mrb[0].mxu0
  %908 = vmatprep.mubr.bf16.mxu0 0
  %909 = vmatmul.mubr.bf16.gmra.mrb[0].mxu0 %v757
  %v910 = vpop.f32.mrb[0].mxu0
  %v911 = vadd.f32 0.0, %v910
  %v912 = vpop.f32.mrb[0].mxu0
  %v913 = vpop.f32.mrb[0].mxu0
  %v914 = vadd.f32 0.0, %v913
  %v915 = vpop.f32.mrb[0].mxu0
  %916 = vmatprep.mubr.bf16.mxu0 0
  %917 = vmatmul.mubr.bf16.gmra.mrb[0].mxu0 %v758
  %v918 = vpop.f32.mrb[0].mxu0
  %v919 = vadd.f32 0.0, %v918
  %v920 = vpop.f32.mrb[0].mxu0
  %v921 = vpop.f32.mrb[0].mxu0
  %v922 = vadd.f32 0.0, %v921
  %v923 = vpop.f32.mrb[0].mxu0
  %924 = vmatprep.mubr.bf16.mxu0 0
  %925 = vmatmul.mubr.bf16.gmra.mrb[0].mxu0 %v759
  %v926 = vpop.f32.mrb[0].mxu0
  %v927 = vadd.f32 0.0, %v926
  %v928 = vpop.f32.mrb[0].mxu0
  %v929 = vpop.f32.mrb[0].mxu0
  %v930 = vadd.f32 0.0, %v929
  %v931 = vpop.f32.mrb[0].mxu0
  %932 = vmatprep.mubr.bf16.mxu0 0
  %933 = vmatmul.mubr.bf16.gmra.mrb[0].mxu0 %v760
  %v934 = vpop.f32.mrb[0].mxu0
  %v935 = vadd.f32 0.0, %v934
  %v936 = vpop.f32.mrb[0].mxu0
  %v937 = vpop.f32.mrb[0].mxu0
  %v938 = vadd.f32 0.0, %v937
  %v939 = vpop.f32.mrb[0].mxu0
  %940 = vmatprep.mubr.bf16.mxu0 0
  %941 = vmatmul.mubr.bf16.gmra.mrb[0].mxu0 %v761
  %v942 = vpop.f32.mrb[0].mxu0
  %v943 = vadd.f32 0.0, %v942
  %v944 = vpop.f32.mrb[0].mxu0
  %v945 = vpop.f32.mrb[0].mxu0
  %v946 = vadd.f32 0.0, %v945
  %v947 = vpop.f32.mrb[0].mxu0
  %948 = vmatprep.mubr.bf16.mxu0 0
  %949 = vmatmul.mubr.bf16.gmra.mrb[0].mxu0 %v762
  %v950 = vpop.f32.mrb[0].mxu0
  %v951 = vadd.f32 0.0, %v950
  %v952 = vpop.f32.mrb[0].mxu0
  %v953 = vpop.f32.mrb[0].mxu0
  %v954 = vadd.f32 0.0, %v953
  %v955 = vpop.f32.mrb[0].mxu0
  %956 = vmatprep.mubr.bf16.mxu0 0
  %957 = vmatmul.mubr.bf16.gmra.mrb[0].mxu0 %v763
  %v958 = vpop.f32.mrb[0].mxu0
  %v959 = vadd.f32 0.0, %v958
  %v960 = vpop.f32.mrb[0].mxu0
  %v961 = vpop.f32.mrb[0].mxu0
  %v962 = vadd.f32 0.0, %v961
  %v963 = vpop.f32.mrb[0].mxu0
  %964 = vdwg.mxu0
  %v965 = vpack.c.bf16 %v866, %v863
  %v966 = vpack.c.bf16 %v874, %v871
  %v967 = vpack.c.bf16 %v882, %v879
  %v968 = vpack.c.bf16 %v890, %v887
  %v969 = vpack.c.bf16 %v898, %v895
  %v970 = vpack.c.bf16 %v906, %v903
  %v971 = vpack.c.bf16 %v914, %v911
  %v972 = vpack.c.bf16 %v922, %v919
  %v973 = vpack.c.bf16 %v930, %v927
  %v974 = vpack.c.bf16 %v938, %v935
  %v975 = vpack.c.bf16 %v946, %v943
  %v976 = vpack.c.bf16 %v954, %v951
  %v977 = vpack.c.bf16 %v962, %v959
  %v991 = vunpack.c.l.b16 %v965
  %v992 = vunpack.c.h.b16 %v965
  %v993 = vunpack.c.l.b16 %v966
  %v994 = vunpack.c.h.b16 %v966
  %v995 = vunpack.c.l.b16 %v967
  %v996 = vunpack.c.h.b16 %v967
  %v997 = vunpack.c.l.b16 %v968
  %v998 = vunpack.c.h.b16 %v968
  %v999 = vunpack.c.l.b16 %v969
  %v1000 = vunpack.c.h.b16 %v969
  %v1001 = vunpack.c.l.b16 %v970
  %v1002 = vunpack.c.h.b16 %v970
  %v1003 = vunpack.c.l.b16 %v971
  %v1004 = vunpack.c.h.b16 %v971
  %v1005 = vunpack.c.l.b16 %v972
  %v1006 = vunpack.c.h.b16 %v972
  %v1007 = vunpack.c.l.b16 %v973
  %v1008 = vunpack.c.h.b16 %v973
  %v1009 = vunpack.c.l.b16 %v974
  %v1010 = vunpack.c.h.b16 %v974
  %v1011 = vunpack.c.l.b16 %v975
  %v1012 = vunpack.c.h.b16 %v975
  %v1013 = vunpack.c.l.b16 %v976
  %v1014 = vunpack.c.h.b16 %v976
  %v1015 = vunpack.c.l.b16 %v977
  %v1016 = vunpack.c.h.b16 %v977
  %v1017 = vpack.c.b16 %v991, %v991
  %v1018 = vpack.c.b16 %v992, %v992
  %v1019 = vpack.c.b16 %v993, %v993
  %v1020 = vpack.c.b16 %v994, %v994
  %v1021 = vpack.c.b16 %v995, %v995
  %v1022 = vpack.c.b16 %v996, %v996
  %v1023 = vpack.c.b16 %v997, %v997
  %v1024 = vpack.c.b16 %v998, %v998
  %v1025 = vpack.c.b16 %v999, %v999
  %v1026 = vpack.c.b16 %v1000, %v1000
  %v1027 = vpack.c.b16 %v1001, %v1001
  %v1028 = vpack.c.b16 %v1002, %v1002
  %v1029 = vpack.c.b16 %v1003, %v1003
  %v1030 = vpack.c.b16 %v1004, %v1004
  %v1031 = vpack.c.b16 %v1005, %v1005
  %v1032 = vpack.c.b16 %v1006, %v1006
  %v1033 = vpack.c.b16 %v1007, %v1007
  %v1034 = vpack.c.b16 %v1008, %v1008
  %v1035 = vpack.c.b16 %v1009, %v1009
  %v1036 = vpack.c.b16 %v1010, %v1010
  %v1037 = vpack.c.b16 %v1011, %v1011
  %v1038 = vpack.c.b16 %v1012, %v1012
  %v1039 = vpack.c.b16 %v1013, %v1013
  %v1040 = vpack.c.b16 %v1014, %v1014
  %v1041 = vpack.c.b16 %v1015, %v1015
  %v1042 = vpack.c.b16 %v1016, %v1016
  %1069 = vst [vmem:[%s5] sm:$0xf] %v1017
  %1070 = vst [vmem:[%s5 + $0x4] sm:$0xf] %v1018
  %1071 = vst [vmem:[%s5 + $0x8] sm:$0xf] %v1019
  %1072 = vst [vmem:[%s5 + $0xc] sm:$0xf] %v1020
  %1073 = vst [vmem:[%s5 + $0x10] sm:$0xf] %v1021
  %1074 = vst [vmem:[%s5 + $0x14] sm:$0xf] %v1022
  %1075 = vst [vmem:[%s5 + $0x18] sm:$0xf] %v1023
  %1076 = vst [vmem:[%s5 + $0x1c] sm:$0xf] %v1024
  %1077 = vst [vmem:[%s5 + $0x20] sm:$0xf] %v1025
  %1078 = vst [vmem:[%s5 + $0x24] sm:$0xf] %v1026
  %1079 = vst [vmem:[%s5 + $0x28] sm:$0xf] %v1027
  %1080 = vst [vmem:[%s5 + $0x2c] sm:$0xf] %v1028
  %1081 = vst [vmem:[%s5 + $0x30] sm:$0xf] %v1029
  %1082 = vst [vmem:[%s5 + $0x34] sm:$0xf] %v1030
  %1083 = vst [vmem:[%s5 + $0x38] sm:$0xf] %v1031
  %1084 = vst [vmem:[%s5 + $0x3c] sm:$0xf] %v1032
  %1085 = vst [vmem:[%s5 + $0x40] sm:$0xf] %v1033
  %1086 = vst [vmem:[%s5 + $0x44] sm:$0xf] %v1034
  %1087 = vst [vmem:[%s5 + $0x48] sm:$0xf] %v1035
  %1088 = vst [vmem:[%s5 + $0x4c] sm:$0xf] %v1036
  %1089 = vst [vmem:[%s5 + $0x50] sm:$0xf] %v1037
  %1090 = vst [vmem:[%s5 + $0x54] sm:$0xf] %v1038
  %1091 = vst [vmem:[%s5 + $0x58] sm:$0xf] %v1039
  %1092 = vst [vmem:[%s5 + $0x5c] sm:$0xf] %v1040
  %1093 = vst [vmem:[%s5 + $0x60] sm:$0xf] %v1041
  %1094 = vst [vmem:[%s5 + $0x64] sm:$0xf] %v1042
  // Predicated region
  $region22: #{net_forward.1} parent=0 // pred_check
    _
  $region23: #{net_forward.1} parent=0 // pred_check_branch
    %1096 = sbr.rel (0) target = $region25
  $region24: #{net_forward.1} parent=0 // pred_region
    _
  $region25: #{net_forward.1} parent=0 // pred_fallthru
    _
  // Predicated region
  $region26: #{net_forward.1} parent=0 // pred_check
    _
  $region27: #{net_forward.1} parent=0 // pred_check_branch
    %1098 = sbr.rel (0) target = $region29
  $region28: #{net_forward.1} parent=0 // pred_region
    _
  $region29: #{net_forward.1} parent=0 // pred_fallthru
    _

</llo_original>
